<compile_context>
chip_gen: v5e
topology: v5e:2x2
jax: 0.10.0
libtpu: 0.0.40
codegen_flags: <defaults>
</compile_context>

<pallas_src>
import functools

import jax
import jax.numpy as jnp
from jax.experimental import pallas as pl
from jax.experimental.pallas import tpu as pltpu


def _round_up(x: int, m: int) -> int:
    return ((x + m - 1) // m) * m


def _cdiv(a: int, b: int) -> int:
    return (a + b - 1) // b


# ----------------------------------------------------------------------------
# Kernel body
# ----------------------------------------------------------------------------
def mlp2_kernel(x_ref, w1_ref, b1_ref, w2_ref, b2_ref, out_ref, *, use_selu=False):
    # In-kernel cast of x to the weight dtype (bf16 path): no extra HBM pass.
    x = x_ref[...].astype(w1_ref.dtype)

    # fc1 on the MXU (f32 accumulation), bias + nonlinearity on the VPU in f32.
    h = jnp.dot(x, w1_ref[...], preferred_element_type=jnp.float32)
    a = h + b1_ref[...]                              # [TM, H] + [1, H] broadcast
    if use_selu:
        alpha = 1.6732632423543772
        scale = 1.0507009873554805
        h = scale * jnp.where(a > 0.0, a, alpha * (jnp.exp(a) - 1.0))
    else:
        h = jnp.maximum(a, 0.0)
    # dropout: identity (eval mode).

    # Fused two-head matmul: single MXU pass over the [H, N_pad] weight slab.
    h = h.astype(w2_ref.dtype)
    o = jnp.dot(h, w2_ref[...], preferred_element_type=jnp.float32)
    out_ref[...] = (o + b2_ref[...]).astype(out_ref.dtype)


# ----------------------------------------------------------------------------
# One-time parameter preparation (hoisted out of the per-call path)
# ----------------------------------------------------------------------------
def mlp2_prepare_params(w1, b1, w21, b21, w22, b22, *, use_bf16=True,
                        lane_multiple=128):
    """Fuse the two heads, pad to a lane-dense width, cast once.

    w*: [in, out] (pre-transposed vs. torch), b*: [1, out].
    lane_multiple: 128 (v5e-matched); use 256 on v6e/v7x when D_out is large.
    """
    D_out = w21.shape[1]
    N = 2 * D_out
    N_pad = _round_up(N, lane_multiple)

    w2 = jnp.concatenate([w21, w22], axis=1)         # [H, 2*D_out]
    b2 = jnp.concatenate([b21, b22], axis=1)         # [1, 2*D_out]
    if N_pad != N:
        w2 = jnp.pad(w2, ((0, 0), (0, N_pad - N)))
        b2 = jnp.pad(b2, ((0, 0), (0, N_pad - N)))

    wdt = jnp.bfloat16 if use_bf16 else jnp.float32
    return {
        "w1": w1.astype(wdt),
        "b1": b1.astype(jnp.float32),
        "w2": w2.astype(wdt),
        "b2": b2.astype(jnp.float32),
        "d_out": D_out,
        "n": N,
    }


# ----------------------------------------------------------------------------
# Tiling / VMEM budgeting helpers
# ----------------------------------------------------------------------------
def _choose_tm(B: int, tm_target: int) -> int:
    # Enough steps to (a) keep tiles <= tm_target and (b) give v7x's two
    # TensorCores >=2 grid steps to shard when B is large enough to split.
    steps = max(_cdiv(B, tm_target), 2 if B >= 32 else 1)
    return max(16, _round_up(_cdiv(B, steps), 16))   # 16: bf16 sublane packing


def _vmem_estimate_bytes(TM, D_in, H, N_pad, x_bytes, w_bytes, out_bytes):
    # Conservative: assume double-buffered weights (covers the fallback path).
    weights = 2 * ((D_in * H + H * N_pad) * w_bytes + (H + N_pad) * 4)
    streamed = 2 * TM * D_in * x_bytes + 2 * TM * N_pad * out_bytes
    interm = TM * H * 4 + TM * H * w_bytes + TM * N_pad * 4
    return weights + streamed + interm


# ----------------------------------------------------------------------------
# Forward wrapper
# ----------------------------------------------------------------------------
def mlp2_forward(x, params, *, tm_target=512, out_dtype=None, use_selu=False):
    """x: [B, D_in]; params from mlp2_prepare_params. Returns (out1, out2)."""
    B, D_in = x.shape
    w1, b1, w2, b2 = params["w1"], params["b1"], params["w2"], params["b2"]
    H = w1.shape[1]
    N_pad = w2.shape[1]
    D_out, N = params["d_out"], params["n"]

    if out_dtype is None:
        out_dtype = jnp.bfloat16 if w1.dtype == jnp.bfloat16 else jnp.float32

    x_bytes = jnp.dtype(x.dtype).itemsize
    w_bytes = jnp.dtype(w1.dtype).itemsize
    out_bytes = jnp.dtype(out_dtype).itemsize

    # ---- batch tiling (padding-waste aware, >=2 steps for megacore) --------
    TM = _choose_tm(B, tm_target)
    VMEM_BUDGET = 32 * 2**20
    while TM > 16 and _vmem_estimate_bytes(TM, D_in, H, N_pad,
                                           x_bytes, w_bytes, out_bytes) > VMEM_BUDGET:
        TM = max(16, _round_up(TM // 2, 16))
    B_pad = _round_up(B, TM)
    x_p = x if B_pad == B else jnp.pad(x, ((0, B_pad - B), (0, 0)))

    est = _vmem_estimate_bytes(TM, D_in, H, N_pad, x_bytes, w_bytes, out_bytes)
    vmem_limit = int(min(max(est * 1.25, 16 * 2**20), 48 * 2**20))

    kernel = functools.partial(mlp2_kernel, use_selu=use_selu)
    grid = (B_pad // TM,)

    def _build(single_buffer_weights):
        wmode = {"pipeline_mode": pl.Buffered(1)} if single_buffer_weights else {}
        return pl.pallas_call(
            kernel,
            out_shape=jax.ShapeDtypeStruct((B_pad, N_pad), out_dtype),
            grid=grid,
            in_specs=[
                pl.BlockSpec((TM, D_in), lambda i: (i, 0)),          # x streamed
                pl.BlockSpec((D_in, H), lambda i: (0, 0), **wmode),  # w1 resident
                pl.BlockSpec((1, H), lambda i: (0, 0), **wmode),     # b1 resident
                pl.BlockSpec((H, N_pad), lambda i: (0, 0), **wmode), # fused w2
                pl.BlockSpec((1, N_pad), lambda i: (0, 0), **wmode), # fused b2
            ],
            out_specs=pl.BlockSpec((TM, N_pad), lambda i: (i, 0)),
            compiler_params=pltpu.CompilerParams(
                dimension_semantics=("parallel",),    # shards batch on v7x 2-TC
                vmem_limit_bytes=vmem_limit,
            ),
        )

    try:
        out = _build(True)(x_p, w1, b1, w2, b2)
    except Exception:
        # Single-buffered resident weights unsupported on this jax/backend:
        # fall back to default double-buffering (identical results).
        out = _build(False)(x_p, w1, b1, w2, b2)

    # Padded rows / padded columns contain garbage by construction — always
    # slice here; never hand the raw padded slab downstream.
    out1 = out[:B, :D_out]
    out2 = out[:B, D_out:N]
    return out1, out2


def mlp2_reference(x, w1, b1, w21, b21, w22, b22):
    h = jnp.maximum(x @ w1 + b1, 0.0)
    return h @ w21 + b21, h @ w22 + b22


if __name__ == "__main__":
    # Small shapes consistent with the module's forward:
    # batch=8, input_size=32, hidden_size=64, output_size=16
    B, D_in, H, D_out = 8, 32, 64, 16

    key = jax.random.PRNGKey(0)
    kx, k1, k2, k3, k4, k5, k6 = jax.random.split(key, 7)

    x = jax.random.normal(kx, (B, D_in), dtype=jnp.float32)

    # Deterministic parameter init (nn.Linear shapes), pre-transposed [in, out].
    w1 = jax.random.normal(k1, (D_in, H), dtype=jnp.float32) * 0.1
    b1 = jax.random.normal(k2, (1, H), dtype=jnp.float32) * 0.1
    w21 = jax.random.normal(k3, (H, D_out), dtype=jnp.float32) * 0.1
    b21 = jax.random.normal(k4, (1, D_out), dtype=jnp.float32) * 0.1
    w22 = jax.random.normal(k5, (H, D_out), dtype=jnp.float32) * 0.1
    b22 = jax.random.normal(k6, (1, D_out), dtype=jnp.float32) * 0.1

    # One-time parameter prep (fusion / padding / bf16 cast) — hoisted out of
    # the per-call path.
    params = mlp2_prepare_params(w1, b1, w21, b21, w22, b22, use_bf16=True)

    out1, out2 = mlp2_forward(x, params)
    out1, out2 = jax.block_until_ready((out1, out2))

    ref1, ref2 = mlp2_reference(x, w1, b1, w21, b21, w22, b22)
    # bf16 MXU operands + bf16 output with f32 accumulation: loose tolerance.
    assert jnp.allclose(out1.astype(jnp.float32), ref1, atol=5e-2, rtol=5e-2), "out1 mismatch"
    assert jnp.allclose(out2.astype(jnp.float32), ref2, atol=5e-2, rtol=5e-2), "out2 mismatch"

    # TODO(synk): training-mode dropout (RNG mask) is not implemented; the
    # kernel matches the module in eval mode where dropout is the identity.
    print("KERNEL_OK")
</pallas_src>

<mosaic_0001>
module attributes {stable_mosaic.version = 11 : i64} {
  func.func @mlp2_kernel(%arg0: i32, %arg1: memref<16x32xf32, #tpu.memory_space<vmem>>, %arg2: memref<32x64xbf16, #tpu.memory_space<vmem>>, %arg3: memref<1x64xf32, #tpu.memory_space<vmem>>, %arg4: memref<64x128xbf16, #tpu.memory_space<vmem>>, %arg5: memref<1x128xf32, #tpu.memory_space<vmem>>, %arg6: memref<16x128xbf16, #tpu.memory_space<vmem>>) attributes {dimension_semantics = [#tpu.dimension_semantics<parallel>], iteration_bounds = array<i64: 1>, scalar_prefetch = 0 : i64, scratch_operands = 0 : i64, tpu.core_type = #tpu.core_type<tc>, window_params = [{transform_indices = @transform_0, window_bounds = array<i64: 16, 32>}, {pipeline_mode = #tpu.pipeline_mode<synchronous>, transform_indices = @transform_1, window_bounds = array<i64: 32, 64>}, {pipeline_mode = #tpu.pipeline_mode<synchronous>, transform_indices = @transform_2, window_bounds = array<i64: 1, 64>}, {pipeline_mode = #tpu.pipeline_mode<synchronous>, transform_indices = @transform_3, window_bounds = array<i64: 64, 128>}, {pipeline_mode = #tpu.pipeline_mode<synchronous>, transform_indices = @transform_4, window_bounds = array<i64: 1, 128>}, {transform_indices = @transform_5, window_bounds = array<i64: 16, 128>}]} {
    %c0 = arith.constant 0 : index
    %c0_0 = arith.constant 0 : index
    %0 = vector.load %arg1[%c0, %c0_0] : memref<16x32xf32, #tpu.memory_space<vmem>>, vector<16x32xf32>
    %1 = arith.truncf %0 : vector<16x32xf32> to vector<16x32xbf16>
    %c0_1 = arith.constant 0 : index
    %c0_2 = arith.constant 0 : index
    %2 = vector.load %arg2[%c0_1, %c0_2] : memref<32x64xbf16, #tpu.memory_space<vmem>>, vector<32x64xbf16>
    %cst = arith.constant dense<0.000000e+00> : vector<16x64xf32>
    %3 = tpu.matmul %1, %2, %cst {dimension_numbers = #tpu.dot_dimension_numbers<[1], [0], [0], [1], [0, 0, 1, 1], [], []>} : vector<16x32xbf16>, vector<32x64xbf16>, vector<16x64xf32> -> vector<16x64xf32>
    %c0_3 = arith.constant 0 : index
    %c0_4 = arith.constant 0 : index
    %4 = vector.load %arg3[%c0_3, %c0_4] : memref<1x64xf32, #tpu.memory_space<vmem>>, vector<1x64xf32>
    %5 = vector.broadcast %4 : vector<1x64xf32> to vector<16x64xf32>
    %6 = arith.addf %3, %5 : vector<16x64xf32>
    %cst_5 = arith.constant 0.000000e+00 : f32
    %7 = vector.broadcast %cst_5 : f32 to vector<16x64xf32>
    %8 = arith.maximumf %6, %7 : vector<16x64xf32>
    %9 = arith.truncf %8 : vector<16x64xf32> to vector<16x64xbf16>
    %c0_6 = arith.constant 0 : index
    %c0_7 = arith.constant 0 : index
    %10 = vector.load %arg4[%c0_6, %c0_7] : memref<64x128xbf16, #tpu.memory_space<vmem>>, vector<64x128xbf16>
    %cst_8 = arith.constant dense<0.000000e+00> : vector<16x128xf32>
    %11 = tpu.matmul %9, %10, %cst_8 {dimension_numbers = #tpu.dot_dimension_numbers<[1], [0], [0], [1], [0, 0, 1, 1], [], []>} : vector<16x64xbf16>, vector<64x128xbf16>, vector<16x128xf32> -> vector<16x128xf32>
    %c0_9 = arith.constant 0 : index
    %c0_10 = arith.constant 0 : index
    %12 = vector.load %arg5[%c0_9, %c0_10] : memref<1x128xf32, #tpu.memory_space<vmem>>, vector<1x128xf32>
    %13 = vector.broadcast %12 : vector<1x128xf32> to vector<16x128xf32>
    %14 = arith.addf %11, %13 : vector<16x128xf32>
    %15 = arith.truncf %14 : vector<16x128xf32> to vector<16x128xbf16>
    %c0_11 = arith.constant 0 : index
    %c0_12 = arith.constant 0 : index
    %16 = vector.load %arg6[%c0_11, %c0_12] : memref<16x128xbf16, #tpu.memory_space<vmem>>, vector<16x128xbf16>
    tpu.vector_store %arg6[%c0_11, %c0_12], %15 {strides = array<i32>} : memref<16x128xbf16, #tpu.memory_space<vmem>>, vector<16x128xbf16>,
    return
  }
  func.func @transform_0(%arg0: i32) -> (i32, i32) {
    %c0_i32 = arith.constant 0 : i32
    %c0_i32_0 = arith.constant 0 : i32
    return %arg0, %c0_i32 : i32, i32
  }
  func.func @transform_1(%arg0: i32) -> (i32, i32) {
    %c0_i32 = arith.constant 0 : i32
    %c0_i32_0 = arith.constant 0 : i32
    %c0_i32_1 = arith.constant 0 : i32
    return %c0_i32, %c0_i32_0 : i32, i32
  }
  func.func @transform_2(%arg0: i32) -> (i32, i32) {
    %c0_i32 = arith.constant 0 : i32
    %c0_i32_0 = arith.constant 0 : i32
    %c0_i32_1 = arith.constant 0 : i32
    return %c0_i32, %c0_i32_0 : i32, i32
  }
  func.func @transform_3(%arg0: i32) -> (i32, i32) {
    %c0_i32 = arith.constant 0 : i32
    %c0_i32_0 = arith.constant 0 : i32
    %c0_i32_1 = arith.constant 0 : i32
    return %c0_i32, %c0_i32_0 : i32, i32
  }
  func.func @transform_4(%arg0: i32) -> (i32, i32) {
    %c0_i32 = arith.constant 0 : i32
    %c0_i32_0 = arith.constant 0 : i32
    %c0_i32_1 = arith.constant 0 : i32
    return %c0_i32, %c0_i32_0 : i32, i32
  }
  func.func @transform_5(%arg0: i32) -> (i32, i32) {
    %c0_i32 = arith.constant 0 : i32
    %c0_i32_0 = arith.constant 0 : i32
    return %arg0, %c0_i32 : i32, i32
  }
}

module attributes {stable_mosaic.version = 11 : i64} {
  func.func @mlp2_kernel(%arg0: i32, %arg1: memref<16x32xf32, #tpu.memory_space<vmem>>, %arg2: memref<32x64xbf16, #tpu.memory_space<vmem>>, %arg3: memref<1x64xf32, #tpu.memory_space<vmem>>, %arg4: memref<64x128xbf16, #tpu.memory_space<vmem>>, %arg5: memref<1x128xf32, #tpu.memory_space<vmem>>, %arg6: memref<16x128xbf16, #tpu.memory_space<vmem>>) attributes {dimension_semantics = [#tpu.dimension_semantics<parallel>], iteration_bounds = array<i64: 1>, scalar_prefetch = 0 : i64, scratch_operands = 0 : i64, tpu.core_type = #tpu.core_type<tc>, window_params = [{transform_indices = @transform_0, window_bounds = array<i64: 16, 32>}, {pipeline_mode = #tpu.pipeline_mode<synchronous>, transform_indices = @transform_1, window_bounds = array<i64: 32, 64>}, {pipeline_mode = #tpu.pipeline_mode<synchronous>, transform_indices = @transform_2, window_bounds = array<i64: 1, 64>}, {pipeline_mode = #tpu.pipeline_mode<synchronous>, transform_indices = @transform_3, window_bounds = array<i64: 64, 128>}, {pipeline_mode = #tpu.pipeline_mode<synchronous>, transform_indices = @transform_4, window_bounds = array<i64: 1, 128>}, {transform_indices = @transform_5, window_bounds = array<i64: 16, 128>}]} {
    %c0 = arith.constant 0 : index
    %c0_0 = arith.constant 0 : index
    %0 = vector.load %arg1[%c0, %c0_0] : memref<16x32xf32, #tpu.memory_space<vmem>>, vector<16x32xf32>
    %1 = arith.truncf %0 : vector<16x32xf32> to vector<16x32xbf16>
    %c0_1 = arith.constant 0 : index
    %c0_2 = arith.constant 0 : index
    %2 = vector.load %arg2[%c0_1, %c0_2] : memref<32x64xbf16, #tpu.memory_space<vmem>>, vector<32x64xbf16>
    %cst = arith.constant dense<0.000000e+00> : vector<16x64xf32>
    %3 = tpu.matmul %1, %2, %cst {dimension_numbers = #tpu.dot_dimension_numbers<[1], [0], [0], [1], [0, 0, 1, 1], [], []>} : vector<16x32xbf16>, vector<32x64xbf16>, vector<16x64xf32> -> vector<16x64xf32>
    %c0_3 = arith.constant 0 : index
    %c0_4 = arith.constant 0 : index
    %4 = vector.load %arg3[%c0_3, %c0_4] : memref<1x64xf32, #tpu.memory_space<vmem>>, vector<1x64xf32>
    %5 = vector.broadcast %4 : vector<1x64xf32> to vector<16x64xf32>
    %6 = arith.addf %3, %5 : vector<16x64xf32>
    %cst_5 = arith.constant 0.000000e+00 : f32
    %7 = vector.broadcast %cst_5 : f32 to vector<16x64xf32>
    %8 = arith.maximumf %6, %7 : vector<16x64xf32>
    %9 = arith.truncf %8 : vector<16x64xf32> to vector<16x64xbf16>
    %c0_6 = arith.constant 0 : index
    %c0_7 = arith.constant 0 : index
    %10 = vector.load %arg4[%c0_6, %c0_7] : memref<64x128xbf16, #tpu.memory_space<vmem>>, vector<64x128xbf16>
    %cst_8 = arith.constant dense<0.000000e+00> : vector<16x128xf32>
    %11 = tpu.matmul %9, %10, %cst_8 {dimension_numbers = #tpu.dot_dimension_numbers<[1], [0], [0], [1], [0, 0, 1, 1], [], []>} : vector<16x64xbf16>, vector<64x128xbf16>, vector<16x128xf32> -> vector<16x128xf32>
    %c0_9 = arith.constant 0 : index
    %c0_10 = arith.constant 0 : index
    %12 = vector.load %arg5[%c0_9, %c0_10] : memref<1x128xf32, #tpu.memory_space<vmem>>, vector<1x128xf32>
    %13 = vector.broadcast %12 : vector<1x128xf32> to vector<16x128xf32>
    %14 = arith.addf %11, %13 : vector<16x128xf32>
    %15 = arith.truncf %14 : vector<16x128xf32> to vector<16x128xbf16>
    %c0_11 = arith.constant 0 : index
    %c0_12 = arith.constant 0 : index
    %16 = vector.load %arg6[%c0_11, %c0_12] : memref<16x128xbf16, #tpu.memory_space<vmem>>, vector<16x128xbf16>
    tpu.vector_store %arg6[%c0_11, %c0_12], %15 {strides = array<i32>} : memref<16x128xbf16, #tpu.memory_space<vmem>>, vector<16x128xbf16>,
    return
  }
  func.func @transform_0(%arg0: i32) -> (i32, i32) {
    %c0_i32 = arith.constant 0 : i32
    %c0_i32_0 = arith.constant 0 : i32
    return %arg0, %c0_i32 : i32, i32
  }
  func.func @transform_1(%arg0: i32) -> (i32, i32) {
    %c0_i32 = arith.constant 0 : i32
    %c0_i32_0 = arith.constant 0 : i32
    %c0_i32_1 = arith.constant 0 : i32
    return %c0_i32, %c0_i32_0 : i32, i32
  }
  func.func @transform_2(%arg0: i32) -> (i32, i32) {
    %c0_i32 = arith.constant 0 : i32
    %c0_i32_0 = arith.constant 0 : i32
    %c0_i32_1 = arith.constant 0 : i32
    return %c0_i32, %c0_i32_0 : i32, i32
  }
  func.func @transform_3(%arg0: i32) -> (i32, i32) {
    %c0_i32 = arith.constant 0 : i32
    %c0_i32_0 = arith.constant 0 : i32
    %c0_i32_1 = arith.constant 0 : i32
    return %c0_i32, %c0_i32_0 : i32, i32
  }
  func.func @transform_4(%arg0: i32) -> (i32, i32) {
    %c0_i32 = arith.constant 0 : i32
    %c0_i32_0 = arith.constant 0 : i32
    %c0_i32_1 = arith.constant 0 : i32
    return %c0_i32, %c0_i32_0 : i32, i32
  }
  func.func @transform_5(%arg0: i32) -> (i32, i32) {
    %c0_i32 = arith.constant 0 : i32
    %c0_i32_0 = arith.constant 0 : i32
    return %arg0, %c0_i32 : i32, i32
  }
}

</mosaic_0001>

<llo_original>
// kernel: tpu_custom_call.1
$region0: #{tpu_custom_call.1}
  #allocation0 [shape = 'u32[]', space=smem, size = 0x4, offset = 0x4, fixed_abs, tag = 'smem constant byte address 0x4 - core index']
  #allocation1 [shape = 'u32[72,128]{1,0:T(1,128)}', space=vmem, size = 0x9000, scoped, tag = 'internal scratch']
  %s0 = inlined_call_operand.hbm [shape: f32[16,32], index: 0, kind: input, shape index: {}]
  %s1 = inlined_call_operand.hbm [shape: bf16[32,64], index: 1, kind: input, shape index: {}]
  %s2 = inlined_call_operand.vmem [shape: f32[1,64], index: 2, kind: input, shape index: {}]
  %s3 = inlined_call_operand.hbm [shape: bf16[64,128], index: 3, kind: input, shape index: {}]
  %s4 = inlined_call_operand.vmem [shape: f32[1,128], index: 4, kind: input, shape index: {}]
  %s5 = inlined_call_operand.hbm [shape: bf16[16,128], index: 5, kind: output, shape index: {}]
  %s6 = sld [smem:[#allocation0]]
  $region42: #{tpu_custom_call.1} parent=0
    _
  %s8 = ssub.s32 1, %s6
  %s9 = scalar_select 0, %s8, %s6
  $region1: #{tpu_custom_call.1} parent=0
    #allocation2 [shape = 'u8[8192]{0}', space=vmem, size = 0x2000, scoped, tag = 'input window, operand 0, single buffered']
    #allocation3 [shape = 's32[1]{0}', space=sflag, size = 0x4, scoped, tag = 'scoped memory for tpu_custom_call.1']
    #allocation4 [shape = 's32[1]{0}', space=sflag, size = 0x4, scoped, tag = 'scoped memory for tpu_custom_call.1']
    #allocation5 [shape = 'u8[8192]{0}', space=vmem, size = 0x2000, scoped, tag = 'input window, operand 1, single buffered']
    #allocation6 [shape = 's32[1]{0}', space=sflag, size = 0x4, scoped, tag = 'scoped memory for tpu_custom_call.1']
    #allocation7 [shape = 'u8[16384]{0}', space=vmem, size = 0x4000, scoped, tag = 'input window, operand 3, single buffered']
    #allocation8 [shape = 'u8[4096]{0}', space=vmem, size = 0x1000, scoped, tag = 'output window, operand 0, single buffered']
    %10 = vsyncpa [#allocation3], 0
    %11 = vsyncpa [#allocation6], 0
    %12 = vsyncpa [#allocation4], 0
    // Predicated region
    $region2: #{tpu_custom_call.1} parent=1 // pred_check
      _
    $region3: #{tpu_custom_call.1} parent=1 // pred_check_branch
      %14 = sbr.rel (0) target = $region5
    $region4: #{tpu_custom_call.1} parent=1 // pred_region
      %16 = vsyncadd [#allocation3], 0
      %s17 = sshll.u32 %s0, 4
      %s18 = int_to_ptr.hbm [resolvable:$true] %s17
      %s19 = sshll.u32 [#allocation2], 4
      %s20 = int_to_ptr.vmem [resolvable:$true] %s19
      %25 = dma.hbm_to_vmem [thread:$0]  %s18, 256, %s20, [#allocation3], 128, 128, 8
    $region5: #{tpu_custom_call.1} parent=1 // pred_fallthru
      _
    // Predicated region
    $region6: #{tpu_custom_call.1} parent=1 // pred_check
      _
    $region7: #{tpu_custom_call.1} parent=1 // pred_check_branch
      %27 = sbr.rel (0) target = $region9
    $region8: #{tpu_custom_call.1} parent=1 // pred_region
      %29 = vsyncadd [#allocation6], 0
      %s30 = sshll.u32 %s1, 4
      %s31 = int_to_ptr.hbm [resolvable:$true] %s30
      %s32 = sshll.u32 [#allocation5], 4
      %s33 = int_to_ptr.vmem [resolvable:$true] %s32
      %38 = dma.hbm_to_vmem [thread:$0]  %s31, 256, %s33, [#allocation6], 64, 64, 4
    $region9: #{tpu_custom_call.1} parent=1 // pred_fallthru
      _
    // Predicated region
    $region10: #{tpu_custom_call.1} parent=1 // pred_check
      _
    $region11: #{tpu_custom_call.1} parent=1 // pred_check_branch
      %40 = sbr.rel (0) target = $region13
    $region12: #{tpu_custom_call.1} parent=1 // pred_region
      _
    $region13: #{tpu_custom_call.1} parent=1 // pred_fallthru
      _
    // Predicated region
    $region14: #{tpu_custom_call.1} parent=1 // pred_check
      _
    $region15: #{tpu_custom_call.1} parent=1 // pred_check_branch
      %42 = sbr.rel (0) target = $region17
    $region16: #{tpu_custom_call.1} parent=1 // pred_region
      %44 = vsyncadd [#allocation6], 0
      %s45 = sshll.u32 %s3, 4
      %s46 = int_to_ptr.hbm [resolvable:$true] %s45
      %s47 = sshll.u32 [#allocation7], 4
      %s48 = int_to_ptr.vmem [resolvable:$true] %s47
      %53 = dma.hbm_to_vmem [thread:$0]  %s46, 512, %s48, [#allocation6], 64, 64, 4
    $region17: #{tpu_custom_call.1} parent=1 // pred_fallthru
      _
    // Predicated region
    $region18: #{tpu_custom_call.1} parent=1 // pred_check
      _
    $region19: #{tpu_custom_call.1} parent=1 // pred_check_branch
      %55 = sbr.rel (0) target = $region21
    $region20: #{tpu_custom_call.1} parent=1 // pred_region
      _
    $region21: #{tpu_custom_call.1} parent=1 // pred_fallthru
      _
    // Predicated region
    $region22: #{tpu_custom_call.1} parent=1 // pred_check
      _
    $region23: #{tpu_custom_call.1} parent=1 // pred_check_branch
      %57 = sbr.rel (0) target = $region25
    $region24: #{tpu_custom_call.1} parent=1 // pred_region
      %59 = dma.done [#allocation3], 256
    $region25: #{tpu_custom_call.1} parent=1 // pred_fallthru
      _
    // Predicated region
    $region26: #{tpu_custom_call.1} parent=1 // pred_check
      _
    $region27: #{tpu_custom_call.1} parent=1 // pred_check_branch
      %61 = sbr.rel (0) target = $region29
    $region28: #{tpu_custom_call.1} parent=1 // pred_region
      %63 = dma.done [#allocation6], 256
    $region29: #{tpu_custom_call.1} parent=1 // pred_fallthru
      _
    // Predicated region
    $region30: #{tpu_custom_call.1} parent=1 // pred_check
      _
    $region31: #{tpu_custom_call.1} parent=1 // pred_check_branch
      %65 = sbr.rel (0) target = $region33
    $region32: #{tpu_custom_call.1} parent=1 // pred_region
      %67 = dma.done [#allocation6], 512
    $region33: #{tpu_custom_call.1} parent=1 // pred_fallthru
      _
    %v69 = vld [vmem:[#allocation2] sm:$0xff]
    %v70 = vld [vmem:[#allocation2 + $0x8] sm:$0xff]
    %v71 = vpack.c.bf16 %v70, %v69
    %v72 = vld [vmem:[#allocation5] sm:$0xf]
    %v73 = vld [vmem:[#allocation5 + $0x4] sm:$0xf]
    %v74 = vld [vmem:[#allocation5 + $0x8] sm:$0xf]
    %v75 = vld [vmem:[#allocation5 + $0xc] sm:$0xf]
    %v76 = vld [vmem:[%s2] sm:$0x1]
    %v78 = vperm.slane %v76, 0
    %v84 = vunpack.c.l.b16 %v72
    %v85 = vunpack.c.l.b16 %v73
    %v86 = vunpack.c.l.b16 %v74
    %v87 = vunpack.c.l.b16 %v75
    %v88 = vpack.c.b16 %v85, %v84
    %v89 = vpack.c.b16 %v87, %v86
    %vm92 = vcmask 261120
    %v94 = vsel %vm92, %v71, 0
    %96 = vmatpush.bf16.msra.mxu0 0
    %97 = vmatpush.bf16.msra.mxu0 0
    %98 = vmatpush.bf16.msra.mxu0 0
    %99 = vmatpush.bf16.msra.mxu0 0
    %100 = vmatpush.bf16.msra.mxu0 0
    %101 = vmatpush.bf16.msra.mxu0 0
    %102 = vmatpush.bf16.msra.mxu0 %v89
    %103 = vmatpush.bf16.msra.mxu0 %v88
    %104 = vmatmul.bf16.gmra.mxu0 %v94
    %v105 = vpop.f32.mrf.mxu0
    %v106 = vadd.f32 %v78, %v105
    %v107 = vpop.f32.mrf.mxu0
    %v108 = vadd.f32 %v78, %v107
    %109 = vdwg.mxu0
    %v110 = vmax.f32 %v106, 0.0
    %v111 = vmax.f32 %v108, 0.0
    %v112 = vpack.c.bf16 %v111, %v110
    %v113 = vld [vmem:[#allocation7] sm:$0xf]
    %v114 = vld [vmem:[#allocation7 + $0x4] sm:$0xf]
    %v115 = vld [vmem:[#allocation7 + $0x8] sm:$0xf]
    %v116 = vld [vmem:[#allocation7 + $0xc] sm:$0xf]
    %v117 = vld [vmem:[#allocation7 + $0x10] sm:$0xf]
    %v118 = vld [vmem:[#allocation7 + $0x14] sm:$0xf]
    %v119 = vld [vmem:[#allocation7 + $0x18] sm:$0xf]
    %v120 = vld [vmem:[#allocation7 + $0x1c] sm:$0xf]
    %v121 = vld [vmem:[%s4] sm:$0x1]
    %v123 = vperm.slane %v121, 0
    %v133 = vunpack.c.l.b16 %v113
    %v134 = vunpack.c.l.b16 %v114
    %v135 = vunpack.c.l.b16 %v115
    %v136 = vunpack.c.l.b16 %v116
    %v137 = vunpack.c.l.b16 %v117
    %v138 = vunpack.c.l.b16 %v118
    %v139 = vunpack.c.l.b16 %v119
    %v140 = vunpack.c.l.b16 %v120
    %v141 = vpack.c.b16 %v134, %v133
    %v142 = vpack.c.b16 %v136, %v135
    %v143 = vpack.c.b16 %v138, %v137
    %v144 = vpack.c.b16 %v140, %v139
    %vm149 = vcmask 523264
    %v151 = vsel %vm149, %v112, 0
    %153 = vmatpush.bf16.msra.mxu0 0
    %154 = vmatpush.bf16.msra.mxu0 0
    %155 = vmatpush.bf16.msra.mxu0 0
    %156 = vmatpush.bf16.msra.mxu0 0
    %157 = vmatpush.bf16.msra.mxu0 %v144
    %158 = vmatpush.bf16.msra.mxu0 %v143
    %159 = vmatpush.bf16.msra.mxu0 %v142
    %160 = vmatpush.bf16.msra.mxu0 %v141
    %161 = vmatmul.bf16.gmra.mxu0 %v151
    %v162 = vpop.f32.mrf.mxu0
    %v163 = vadd.f32 %v123, %v162
    %v164 = vpop.f32.mrf.mxu0
    %v165 = vadd.f32 %v123, %v164
    %166 = vdwg.mxu0
    %v167 = vpack.c.bf16 %v163, %v163
    %v168 = vpack.c.bf16 %v165, %v165
    %169 = vst [vmem:[#allocation8] sm:$0xf] %v167
    %170 = vst [vmem:[#allocation8 + $0x4] sm:$0xf] %v168
    // Predicated region
    $region34: #{tpu_custom_call.1} parent=1 // pred_check
      _
    $region35: #{tpu_custom_call.1} parent=1 // pred_check_branch
      %172 = sbr.rel (0) target = $region37
    $region36: #{tpu_custom_call.1} parent=1 // pred_region
      %174 = vsyncadd [#allocation4], 0
      %s175 = sshll.u32 [#allocation8], 4
      %s176 = int_to_ptr.vmem [resolvable:$true] %s175
      %s177 = sshll.u32 %s5, 4
      %s178 = int_to_ptr.hbm [resolvable:$true] %s177
      %183 = dma.vmem_to_hbm [thread:$0]  %s176, 128, %s178, [#allocation4], 64, 64, 4
    $region37: #{tpu_custom_call.1} parent=1 // pred_fallthru
      _
    // Predicated region
    $region38: #{tpu_custom_call.1} parent=1 // pred_check
      _
    $region39: #{tpu_custom_call.1} parent=1 // pred_check_branch
      %185 = sbr.rel (0) target = $region41
    $region40: #{tpu_custom_call.1} parent=1 // pred_region
      %187 = dma.done [#allocation4], 128
    $region41: #{tpu_custom_call.1} parent=1 // pred_fallthru
      _
    %188 = vsyncpa [#allocation3], 1
    %189 = vsyncpa [#allocation6], 1
    %190 = vsyncpa [#allocation4], 1

// kernel: tpu_custom_call.1
$region0: #{tpu_custom_call.1}
  #allocation0 [shape = 'u32[]', space=smem, size = 0x4, offset = 0x4, fixed_abs, tag = 'smem constant byte address 0x4 - core index']
  #allocation1 [shape = 'u32[72,128]{1,0:T(1,128)}', space=vmem, size = 0x9000, scoped, tag = 'internal scratch']
  %s0 = inlined_call_operand.hbm [shape: f32[16,32], index: 0, kind: input, shape index: {}]
  %s1 = inlined_call_operand.hbm [shape: bf16[32,64], index: 1, kind: input, shape index: {}]
  %s2 = inlined_call_operand.vmem [shape: f32[1,64], index: 2, kind: input, shape index: {}]
  %s3 = inlined_call_operand.hbm [shape: bf16[64,128], index: 3, kind: input, shape index: {}]
  %s4 = inlined_call_operand.vmem [shape: f32[1,128], index: 4, kind: input, shape index: {}]
  %s5 = inlined_call_operand.hbm [shape: bf16[16,128], index: 5, kind: output, shape index: {}]
  %s6 = sld [smem:[#allocation0]]
  $region42: #{tpu_custom_call.1} parent=0
    _
  %s8 = ssub.s32 1, %s6
  %s9 = scalar_select 0, %s8, %s6
  $region1: #{tpu_custom_call.1} parent=0
    #allocation2 [shape = 'u8[8192]{0}', space=vmem, size = 0x2000, scoped, tag = 'input window, operand 0, single buffered']
    #allocation3 [shape = 's32[1]{0}', space=sflag, size = 0x4, scoped, tag = 'scoped memory for tpu_custom_call.1']
    #allocation4 [shape = 's32[1]{0}', space=sflag, size = 0x4, scoped, tag = 'scoped memory for tpu_custom_call.1']
    #allocation5 [shape = 'u8[8192]{0}', space=vmem, size = 0x2000, scoped, tag = 'input window, operand 1, single buffered']
    #allocation6 [shape = 's32[1]{0}', space=sflag, size = 0x4, scoped, tag = 'scoped memory for tpu_custom_call.1']
    #allocation7 [shape = 'u8[16384]{0}', space=vmem, size = 0x4000, scoped, tag = 'input window, operand 3, single buffered']
    #allocation8 [shape = 'u8[4096]{0}', space=vmem, size = 0x1000, scoped, tag = 'output window, operand 0, single buffered']
    %10 = vsyncpa [#allocation3], 0
    %11 = vsyncpa [#allocation6], 0
    %12 = vsyncpa [#allocation4], 0
    // Predicated region
    $region2: #{tpu_custom_call.1} parent=1 // pred_check
      _
    $region3: #{tpu_custom_call.1} parent=1 // pred_check_branch
      %14 = sbr.rel (0) target = $region5
    $region4: #{tpu_custom_call.1} parent=1 // pred_region
      %16 = vsyncadd [#allocation3], 0
      %s17 = sshll.u32 %s0, 4
      %s18 = int_to_ptr.hbm [resolvable:$true] %s17
      %s19 = sshll.u32 [#allocation2], 4
      %s20 = int_to_ptr.vmem [resolvable:$true] %s19
      %25 = dma.hbm_to_vmem [thread:$0]  %s18, 256, %s20, [#allocation3], 128, 128, 8
    $region5: #{tpu_custom_call.1} parent=1 // pred_fallthru
      _
    // Predicated region
    $region6: #{tpu_custom_call.1} parent=1 // pred_check
      _
    $region7: #{tpu_custom_call.1} parent=1 // pred_check_branch
      %27 = sbr.rel (0) target = $region9
    $region8: #{tpu_custom_call.1} parent=1 // pred_region
      %29 = vsyncadd [#allocation6], 0
      %s30 = sshll.u32 %s1, 4
      %s31 = int_to_ptr.hbm [resolvable:$true] %s30
      %s32 = sshll.u32 [#allocation5], 4
      %s33 = int_to_ptr.vmem [resolvable:$true] %s32
      %38 = dma.hbm_to_vmem [thread:$0]  %s31, 256, %s33, [#allocation6], 64, 64, 4
    $region9: #{tpu_custom_call.1} parent=1 // pred_fallthru
      _
    // Predicated region
    $region10: #{tpu_custom_call.1} parent=1 // pred_check
      _
    $region11: #{tpu_custom_call.1} parent=1 // pred_check_branch
      %40 = sbr.rel (0) target = $region13
    $region12: #{tpu_custom_call.1} parent=1 // pred_region
      _
    $region13: #{tpu_custom_call.1} parent=1 // pred_fallthru
      _
    // Predicated region
    $region14: #{tpu_custom_call.1} parent=1 // pred_check
      _
    $region15: #{tpu_custom_call.1} parent=1 // pred_check_branch
      %42 = sbr.rel (0) target = $region17
    $region16: #{tpu_custom_call.1} parent=1 // pred_region
      %44 = vsyncadd [#allocation6], 0
      %s45 = sshll.u32 %s3, 4
      %s46 = int_to_ptr.hbm [resolvable:$true] %s45
      %s47 = sshll.u32 [#allocation7], 4
      %s48 = int_to_ptr.vmem [resolvable:$true] %s47
      %53 = dma.hbm_to_vmem [thread:$0]  %s46, 512, %s48, [#allocation6], 64, 64, 4
    $region17: #{tpu_custom_call.1} parent=1 // pred_fallthru
      _
    // Predicated region
    $region18: #{tpu_custom_call.1} parent=1 // pred_check
      _
    $region19: #{tpu_custom_call.1} parent=1 // pred_check_branch
      %55 = sbr.rel (0) target = $region21
    $region20: #{tpu_custom_call.1} parent=1 // pred_region
      _
    $region21: #{tpu_custom_call.1} parent=1 // pred_fallthru
      _
    // Predicated region
    $region22: #{tpu_custom_call.1} parent=1 // pred_check
      _
    $region23: #{tpu_custom_call.1} parent=1 // pred_check_branch
      %57 = sbr.rel (0) target = $region25
    $region24: #{tpu_custom_call.1} parent=1 // pred_region
      %59 = dma.done [#allocation3], 256
    $region25: #{tpu_custom_call.1} parent=1 // pred_fallthru
      _
    // Predicated region
    $region26: #{tpu_custom_call.1} parent=1 // pred_check
      _
    $region27: #{tpu_custom_call.1} parent=1 // pred_check_branch
      %61 = sbr.rel (0) target = $region29
    $region28: #{tpu_custom_call.1} parent=1 // pred_region
      %63 = dma.done [#allocation6], 256
    $region29: #{tpu_custom_call.1} parent=1 // pred_fallthru
      _
    // Predicated region
    $region30: #{tpu_custom_call.1} parent=1 // pred_check
      _
    $region31: #{tpu_custom_call.1} parent=1 // pred_check_branch
      %65 = sbr.rel (0) target = $region33
    $region32: #{tpu_custom_call.1} parent=1 // pred_region
      %67 = dma.done [#allocation6], 512
    $region33: #{tpu_custom_call.1} parent=1 // pred_fallthru
      _
    %v69 = vld [vmem:[#allocation2] sm:$0xff]
    %v70 = vld [vmem:[#allocation2 + $0x8] sm:$0xff]
    %v71 = vpack.c.bf16 %v70, %v69
    %v72 = vld [vmem:[#allocation5] sm:$0xf]
    %v73 = vld [vmem:[#allocation5 + $0x4] sm:$0xf]
    %v74 = vld [vmem:[#allocation5 + $0x8] sm:$0xf]
    %v75 = vld [vmem:[#allocation5 + $0xc] sm:$0xf]
    %v76 = vld [vmem:[%s2] sm:$0x1]
    %v78 = vperm.slane %v76, 0
    %v84 = vunpack.c.l.b16 %v72
    %v85 = vunpack.c.l.b16 %v73
    %v86 = vunpack.c.l.b16 %v74
    %v87 = vunpack.c.l.b16 %v75
    %v88 = vpack.c.b16 %v85, %v84
    %v89 = vpack.c.b16 %v87, %v86
    %vm92 = vcmask 261120
    %v94 = vsel %vm92, %v71, 0
    %96 = vmatpush.bf16.msra.mxu0 0
    %97 = vmatpush.bf16.msra.mxu0 0
    %98 = vmatpush.bf16.msra.mxu0 0
    %99 = vmatpush.bf16.msra.mxu0 0
    %100 = vmatpush.bf16.msra.mxu0 0
    %101 = vmatpush.bf16.msra.mxu0 0
    %102 = vmatpush.bf16.msra.mxu0 %v89
    %103 = vmatpush.bf16.msra.mxu0 %v88
    %104 = vmatmul.bf16.gmra.mxu0 %v94
    %v105 = vpop.f32.mrf.mxu0
    %v106 = vadd.f32 %v78, %v105
    %v107 = vpop.f32.mrf.mxu0
    %v108 = vadd.f32 %v78, %v107
    %109 = vdwg.mxu0
    %v110 = vmax.f32 %v106, 0.0
    %v111 = vmax.f32 %v108, 0.0
    %v112 = vpack.c.bf16 %v111, %v110
    %v113 = vld [vmem:[#allocation7] sm:$0xf]
    %v114 = vld [vmem:[#allocation7 + $0x4] sm:$0xf]
    %v115 = vld [vmem:[#allocation7 + $0x8] sm:$0xf]
    %v116 = vld [vmem:[#allocation7 + $0xc] sm:$0xf]
    %v117 = vld [vmem:[#allocation7 + $0x10] sm:$0xf]
    %v118 = vld [vmem:[#allocation7 + $0x14] sm:$0xf]
    %v119 = vld [vmem:[#allocation7 + $0x18] sm:$0xf]
    %v120 = vld [vmem:[#allocation7 + $0x1c] sm:$0xf]
    %v121 = vld [vmem:[%s4] sm:$0x1]
    %v123 = vperm.slane %v121, 0
    %v133 = vunpack.c.l.b16 %v113
    %v134 = vunpack.c.l.b16 %v114
    %v135 = vunpack.c.l.b16 %v115
    %v136 = vunpack.c.l.b16 %v116
    %v137 = vunpack.c.l.b16 %v117
    %v138 = vunpack.c.l.b16 %v118
    %v139 = vunpack.c.l.b16 %v119
    %v140 = vunpack.c.l.b16 %v120
    %v141 = vpack.c.b16 %v134, %v133
    %v142 = vpack.c.b16 %v136, %v135
    %v143 = vpack.c.b16 %v138, %v137
    %v144 = vpack.c.b16 %v140, %v139
    %vm149 = vcmask 523264
    %v151 = vsel %vm149, %v112, 0
    %153 = vmatpush.bf16.msra.mxu0 0
    %154 = vmatpush.bf16.msra.mxu0 0
    %155 = vmatpush.bf16.msra.mxu0 0
    %156 = vmatpush.bf16.msra.mxu0 0
    %157 = vmatpush.bf16.msra.mxu0 %v144
    %158 = vmatpush.bf16.msra.mxu0 %v143
    %159 = vmatpush.bf16.msra.mxu0 %v142
    %160 = vmatpush.bf16.msra.mxu0 %v141
    %161 = vmatmul.bf16.gmra.mxu0 %v151
    %v162 = vpop.f32.mrf.mxu0
    %v163 = vadd.f32 %v123, %v162
    %v164 = vpop.f32.mrf.mxu0
    %v165 = vadd.f32 %v123, %v164
    %166 = vdwg.mxu0
    %v167 = vpack.c.bf16 %v163, %v163
    %v168 = vpack.c.bf16 %v165, %v165
    %169 = vst [vmem:[#allocation8] sm:$0xf] %v167
    %170 = vst [vmem:[#allocation8 + $0x4] sm:$0xf] %v168
    // Predicated region
    $region34: #{tpu_custom_call.1} parent=1 // pred_check
      _
    $region35: #{tpu_custom_call.1} parent=1 // pred_check_branch
      %172 = sbr.rel (0) target = $region37
    $region36: #{tpu_custom_call.1} parent=1 // pred_region
      %174 = vsyncadd [#allocation4], 0
      %s175 = sshll.u32 [#allocation8], 4
      %s176 = int_to_ptr.vmem [resolvable:$true] %s175
      %s177 = sshll.u32 %s5, 4
      %s178 = int_to_ptr.hbm [resolvable:$true] %s177
      %183 = dma.vmem_to_hbm [thread:$0]  %s176, 128, %s178, [#allocation4], 64, 64, 4
    $region37: #{tpu_custom_call.1} parent=1 // pred_fallthru
      _
    // Predicated region
    $region38: #{tpu_custom_call.1} parent=1 // pred_check
      _
    $region39: #{tpu_custom_call.1} parent=1 // pred_check_branch
      %185 = sbr.rel (0) target = $region41
    $region40: #{tpu_custom_call.1} parent=1 // pred_region
      %187 = dma.done [#allocation4], 128
    $region41: #{tpu_custom_call.1} parent=1 // pred_fallthru
      _
    %188 = vsyncpa [#allocation3], 1
    %189 = vsyncpa [#allocation6], 1
    %190 = vsyncpa [#allocation4], 1

</llo_original>
